<compile_context>
chip_gen: v7x
topology: tpu7x:2x2x1
jax: 0.10.0
libtpu: 0.0.40
codegen_flags: <defaults>
</compile_context>

<pallas_src>
import jax
import jax.numpy as jnp
from jax.experimental import pallas as pl
from jax.experimental.pallas import tpu as pltpu


# --------------------------------------------------------------------------
# Small helpers
# --------------------------------------------------------------------------
def _round_up(x, m):
    return (x + m - 1) // m * m


def _cdiv(a, b):
    return -(-a // b)


def _sublane_pack(dtype):
    # Sublane packing: 8 for 4-byte, 16 for 2-byte, 32 for 1-byte dtypes.
    return max(8, 32 // jnp.dtype(dtype).itemsize)


def _divisors(n):
    ds = []
    i = 1
    while i * i <= n:
        if n % i == 0:
            ds.append(i)
            if i != n // i:
                ds.append(n // i)
        i += 1
    return sorted(ds)


def _device_kind():
    try:
        return jax.devices()[0].device_kind.lower()
    except Exception:
        return ""


def _vmem_limit_bytes():
    """Explicit scoped-VMEM limit: ~3/4 of physical VMEM so the number is
    correct on every generation (v5e/v6e: 128 MiB physical, 16/32 MiB scoped
    default; v7x: 64 MiB physical, 32 MiB default)."""
    try:
        cap = int(pltpu.get_tpu_info().vmem_capacity_bytes)
    except Exception:
        cap = 64 * 1024 * 1024            # v7x-sized conservative fallback
    return (cap * 3 // 4) // (1024 * 1024) * (1024 * 1024)


def _row_axis_semantics():
    """v7x has 2 TensorCores/chip; only CORE_PARALLEL actually shards a grid
    axis across them ('parallel' has near-zero codegen effect)."""
    if "v7" in _device_kind():
        return getattr(pltpu, "CORE_PARALLEL", pltpu.PARALLEL)
    return pltpu.PARALLEL


# --------------------------------------------------------------------------
# Kernels
# --------------------------------------------------------------------------
def _make_se_kernel(inv_hw):
    """Single pass: f32 mean over lanes -> sigmoid -> broadcast multiply."""
    # inv_hw is a plain Python float: it lowers to a scalar literal, NOT a
    # captured constant (which pallas_call rejects).

    def kernel(x_ref, o_ref):
        x = x_ref[...]
        # Accumulate the reduction in f32 without a block-sized f32 temp;
        # divide by the TRUE H*W.
        s = jnp.sum(x, axis=-1, keepdims=True, dtype=jnp.float32) * inv_hw
        scale = jax.nn.sigmoid(s)
        o_ref[...] = (x * scale.astype(x.dtype)).astype(o_ref.dtype)

    return kernel


def _make_partial_sum_kernel(inv_hw):
    """Two-pass fallback / pass 1: sigmoid(mean) per row over hw chunks."""

    def kernel(x_ref, s_ref, acc_ref):
        k = pl.program_id(1)

        @pl.when(k == 0)
        def _():
            acc_ref[...] = jnp.zeros_like(acc_ref)

        acc_ref[...] += jnp.sum(x_ref[...], axis=-1, keepdims=True,
                                dtype=jnp.float32)

        @pl.when(k == pl.num_programs(1) - 1)
        def _():
            s_ref[...] = jax.nn.sigmoid(acc_ref[...] * inv_hw)

    return kernel


def _apply_scale_kernel(x_ref, s_ref, o_ref):
    """Two-pass fallback / pass 2: broadcast multiply by the per-row scale."""
    x = x_ref[...]
    o_ref[...] = (x * s_ref[...].astype(x.dtype)).astype(o_ref.dtype)


# --------------------------------------------------------------------------
# Wrapper
# --------------------------------------------------------------------------
def squeeze_excitation_scale(x, *, target_block_bytes=None, force_two_pass=False):
    """x: (N, C, H, W). Returns x * sigmoid(mean(x, axis=(H, W)))."""
    N, C, H, W = x.shape
    rows, hw = N * C, H * W
    dtype = x.dtype
    itemsize = jnp.dtype(dtype).itemsize
    pack = _sublane_pack(dtype)
    inv_hw = float(1.0 / hw)                 # always divide by the TRUE H*W

    vmem_limit = _vmem_limit_bytes()
    # Per-block budget: double-buffered in + out = 4 live blocks; /5 leaves
    # headroom for the f32 row sums and compiler scratch.
    max_block_bytes = vmem_limit // 5
    if target_block_bytes is None:
        # ~4 MiB blocks (6 MiB on v7x's 3.2 TB/s HBM) amortize the ~0.35 us
        # per-step pipeline overhead while staying inside the budget.
        want = 6 * 1024 * 1024 if "v7" in _device_kind() else 4 * 1024 * 1024
        target_block_bytes = min(want, max_block_bytes)
    target_block_bytes = max(1, min(target_block_bytes, max_block_bytes))

    x2d = x.reshape(rows, hw)
    row_bytes = hw * itemsize
    row_sem = _row_axis_semantics()
    cost = pl.CostEstimate(flops=2 * rows * hw, transcendentals=rows,
                           bytes_accessed=2 * rows * hw * itemsize)

    single_pass = (not force_two_pass) and (
        min(rows, pack) * row_bytes <= max_block_bytes)

    if single_pass:
        # Row tile: a divisor of rows (multiple of the sublane pack, or the
        # full row extent) closest to the target block size -> no row padding.
        # Lane dim of the block is the TRUE hw (full-array-dim exception), so
        # unaligned H*W costs one masked trailing store, not a padded copy.
        cands = [d for d in _divisors(rows)
                 if (d % pack == 0 or d == rows)
                 and d * row_bytes <= max_block_bytes]
        if cands:
            tile_rows = min(
                cands,
                key=lambda d: (abs(d * row_bytes - target_block_bytes), -d))
            rows_pad = rows
        else:
            # Rare (e.g. N*C a large prime): pad rows to a pack multiple.
            max_rows = (max_block_bytes // row_bytes) // pack * pack
            want_rows = max(pack, (target_block_bytes // row_bytes) // pack * pack)
            tile_rows = max(pack, min(max_rows, want_rows))
            rows_pad = _round_up(rows, tile_rows)

        xin = x2d if rows_pad == rows else jnp.pad(
            x2d, ((0, rows_pad - rows), (0, 0)))

        out2d = pl.pallas_call(
            _make_se_kernel(inv_hw),
            out_shape=jax.ShapeDtypeStruct((rows_pad, hw), dtype),
            grid_spec=pltpu.PrefetchScalarGridSpec(
                num_scalar_prefetch=0,
                grid=(rows_pad // tile_rows,),
                in_specs=[pl.BlockSpec((tile_rows, hw), lambda i: (i, 0))],
                out_specs=pl.BlockSpec((tile_rows, hw), lambda i: (i, 0)),
            ),
            compiler_params=pltpu.CompilerParams(
                dimension_semantics=(row_sem,),
                vmem_limit_bytes=vmem_limit),
            cost_estimate=cost,
        )(xin)

    else:
        # Very-large-H*W fallback (3x HBM traffic instead of 2x): chunk the
        # spatial axis so no block exceeds the per-block VMEM budget.
        cands = [d for d in _divisors(rows)
                 if (d % pack == 0 or d == rows) and d <= 8 * pack]
        tile_rows = max(cands) if cands else pack
        rows_pad = rows if rows % tile_rows == 0 else _round_up(rows, tile_rows)

        hw128 = _round_up(hw, 128)
        max_chunk = max(128, (target_block_bytes // (tile_rows * itemsize))
                        // 128 * 128)
        n_k = _cdiv(hw128, max_chunk)
        hw_chunk = _round_up(_cdiv(hw128, n_k), 128)
        hw_pad = n_k * hw_chunk

        xin = x2d
        if rows_pad != rows or hw_pad != hw:
            # Zero padding never changes the mean (divide by the TRUE H*W).
            xin = jnp.pad(x2d, ((0, rows_pad - rows), (0, hw_pad - hw)))

        grid = (rows_pad // tile_rows, n_k)

        # Pass 1: per-row sigmoid(mean), f32 accumulator across hw chunks.
        scale = pl.pallas_call(
            _make_partial_sum_kernel(inv_hw),
            out_shape=jax.ShapeDtypeStruct((rows_pad, 1), jnp.float32),
            grid_spec=pltpu.PrefetchScalarGridSpec(
                num_scalar_prefetch=0,
                grid=grid,
                in_specs=[pl.BlockSpec((tile_rows, hw_chunk),
                                       lambda i, k: (i, k))],
                out_specs=pl.BlockSpec((tile_rows, 1), lambda i, k: (i, 0)),
                scratch_shapes=[pltpu.VMEM((tile_rows, 1), jnp.float32)],
            ),
            compiler_params=pltpu.CompilerParams(
                dimension_semantics=(row_sem, pltpu.ARBITRARY),
                vmem_limit_bytes=vmem_limit),
        )(xin)

        # Pass 2: broadcast multiply (fully parallel grid).
        out2d = pl.pallas_call(
            _apply_scale_kernel,
            out_shape=jax.ShapeDtypeStruct((rows_pad, hw_pad), dtype),
            grid_spec=pltpu.PrefetchScalarGridSpec(
                num_scalar_prefetch=0,
                grid=grid,
                in_specs=[pl.BlockSpec((tile_rows, hw_chunk),
                                       lambda i, k: (i, k)),
                          pl.BlockSpec((tile_rows, 1), lambda i, k: (i, 0))],
                out_specs=pl.BlockSpec((tile_rows, hw_chunk),
                                       lambda i, k: (i, k)),
            ),
            compiler_params=pltpu.CompilerParams(
                dimension_semantics=(row_sem, pltpu.PARALLEL),
                vmem_limit_bytes=vmem_limit),
            cost_estimate=cost,
        )(xin, scale)

    if out2d.shape != (rows, hw):
        out2d = out2d[:rows, :hw]
    return out2d.reshape(N, C, H, W)


# --------------------------------------------------------------------------
# Reference & demo
# --------------------------------------------------------------------------
def _reference(x):
    w = jnp.mean(x.astype(jnp.float32), axis=(2, 3), keepdims=True)
    w = jax.nn.sigmoid(w)
    return (x.astype(jnp.float32) * w).astype(x.dtype)


if __name__ == "__main__":
    key = jax.random.PRNGKey(0)
    k1, k2, k3 = jax.random.split(key, 3)

    # Case 1: aligned f32 (single-pass, no padding).
    x1 = jax.random.normal(k1, (2, 4, 16, 16), dtype=jnp.float32)
    o1 = jax.block_until_ready(squeeze_excitation_scale(x1))
    assert o1.shape == x1.shape
    assert jnp.allclose(o1, _reference(x1), atol=1e-5, rtol=1e-5), "case 1 mismatch"

    # Case 2: unaligned H*W (=196) and rows (=6): full-dim blocks, no padding.
    x2 = jax.random.normal(k2, (2, 3, 14, 14), dtype=jnp.float32)
    o2 = jax.block_until_ready(squeeze_excitation_scale(x2))
    assert jnp.allclose(o2, _reference(x2), atol=1e-5, rtol=1e-5), "case 2 mismatch"

    # Case 3: bf16 input (f32 mean accumulation, native-dtype multiply).
    x3 = jax.random.normal(k3, (2, 4, 16, 16), dtype=jnp.bfloat16)
    o3 = jax.block_until_ready(squeeze_excitation_scale(x3))
    assert jnp.allclose(o3.astype(jnp.float32),
                        _reference(x3).astype(jnp.float32),
                        atol=5e-2, rtol=5e-2), "case 3 mismatch"

    # Case 4: exercise the large-H*W two-pass structural path on a small shape.
    o4 = jax.block_until_ready(
        squeeze_excitation_scale(x1, force_two_pass=True,
                                 target_block_bytes=4096))
    assert jnp.allclose(o4, _reference(x1), atol=1e-5, rtol=1e-5), "case 4 mismatch"

    print("KERNEL_OK")
</pallas_src>

<mosaic_0001>
module attributes {stable_mosaic.version = 11 : i64} {
  func.func @kernel(%arg0: i32, %arg1: memref<8x256xf32, #tpu.memory_space<vmem>>, %arg2: memref<8x256xf32, #tpu.memory_space<vmem>>) attributes {dimension_semantics = [#tpu.dimension_semantics<parallel>], iteration_bounds = array<i64: 1>, scalar_prefetch = 0 : i64, scratch_operands = 0 : i64, tpu.core_type = #tpu.core_type<tc>, window_params = [{transform_indices = @transform_0, window_bounds = array<i64: 8, 256>}, {transform_indices = @transform_1, window_bounds = array<i64: 8, 256>}]} {
    %c0 = arith.constant 0 : index
    %c0_0 = arith.constant 0 : index
    %0 = vector.load %arg1[%c0, %c0_0] : memref<8x256xf32, #tpu.memory_space<vmem>>, vector<8x256xf32>
    %cst = arith.constant dense<0.000000e+00> : vector<8xf32>
    %1 = vector.multi_reduction <add>, %0, %cst [1] : vector<8x256xf32> to vector<8xf32>
    %2 = vector.shape_cast %1 : vector<8xf32> to vector<8x1xf32>
    %cst_1 = arith.constant 3.906250e-03 : f32
    %3 = vector.broadcast %cst_1 : f32 to vector<8x1xf32>
    %4 = arith.mulf %2, %3 : vector<8x1xf32>
    %5 = arith.negf %4 : vector<8x1xf32>
    %6 = math.exp %5 : vector<8x1xf32>
    %cst_2 = arith.constant 1.000000e+00 : f32
    %7 = vector.broadcast %cst_2 : f32 to vector<8x1xf32>
    %8 = arith.addf %7, %6 : vector<8x1xf32>
    %9 = arith.divf %7, %8 : vector<8x1xf32>
    %10 = vector.broadcast %9 : vector<8x1xf32> to vector<8x256xf32>
    %11 = arith.mulf %0, %10 : vector<8x256xf32>
    %c0_3 = arith.constant 0 : index
    %c0_4 = arith.constant 0 : index
    %12 = vector.load %arg2[%c0_3, %c0_4] : memref<8x256xf32, #tpu.memory_space<vmem>>, vector<8x256xf32>
    tpu.vector_store %arg2[%c0_3, %c0_4], %11 {strides = array<i32>} : memref<8x256xf32, #tpu.memory_space<vmem>>, vector<8x256xf32>,
    return
  }
  func.func @transform_0(%arg0: i32) -> (i32, i32) {
    %c0_i32 = arith.constant 0 : i32
    %c0_i32_0 = arith.constant 0 : i32
    return %arg0, %c0_i32 : i32, i32
  }
  func.func @transform_1(%arg0: i32) -> (i32, i32) {
    %c0_i32 = arith.constant 0 : i32
    %c0_i32_0 = arith.constant 0 : i32
    return %arg0, %c0_i32 : i32, i32
  }
}

</mosaic_0001>

<llo_original>
// kernel: tpu_custom_call.1
$region0: #{tpu_custom_call.1}
  #allocation0 [shape = 'u32[]', space=smem, size = 0x4, offset = 0x4, fixed_abs, tag = 'smem constant byte address 0x4 - core index']
  #allocation1 [shape = 'u32[144,128]{1,0:T(1,128)}', space=vmem, size = 0x12000, scoped, tag = 'internal scratch']
  %s0 = inlined_call_operand.hbm [shape: f32[8,256], index: 0, kind: input, shape index: {}]
  %s1 = inlined_call_operand.hbm [shape: f32[8,256], index: 1, kind: output, shape index: {}]
  %s2 = sld [smem:[#allocation0]]
  $region18: #{tpu_custom_call.1} parent=0
    _
  %s4 = ssub.s32 1, %s2
  %s5 = scalar_select 0, %s4, %s2
  $region1: #{tpu_custom_call.1} parent=0
    #allocation2 [shape = 'u8[8192]{0}', space=vmem, size = 0x2000, scoped, tag = 'input window, operand 0, single buffered']
    #allocation3 [shape = 's32[1]{0}', space=sflag, size = 0x4, scoped, tag = 'scoped memory for tpu_custom_call.1']
    #allocation4 [shape = 's32[1]{0}', space=sflag, size = 0x4, scoped, tag = 'scoped memory for tpu_custom_call.1']
    #allocation5 [shape = 'u8[8192]{0}', space=vmem, size = 0x2000, scoped, tag = 'output window, operand 0, single buffered']
    %6 = vsyncpa [#allocation3], 0
    %7 = vsyncpa [#allocation4], 0
    // Predicated region
    $region2: #{tpu_custom_call.1} parent=1 // pred_check
      _
    $region3: #{tpu_custom_call.1} parent=1 // pred_check_branch
      %9 = sbr.rel (0) target = $region5
    $region4: #{tpu_custom_call.1} parent=1 // pred_region
      %s11 = ssub.s32 256, 256
      %12 = vsyncadd [#allocation3], %s11
      %s14 = sshll.u32 [#allocation2], 4
      %s15 = int_to_ptr.vmem [resolvable:$true] %s14
      %17 = dma.hbm_to_vmem [thread:$0]  %s0, 256, %s15, [#allocation3]
    $region5: #{tpu_custom_call.1} parent=1 // pred_fallthru
      _
    // Predicated region
    $region6: #{tpu_custom_call.1} parent=1 // pred_check
      _
    $region7: #{tpu_custom_call.1} parent=1 // pred_check_branch
      %19 = sbr.rel (0) target = $region9
    $region8: #{tpu_custom_call.1} parent=1 // pred_region
      %20 = dma.done [#allocation3], 256
    $region9: #{tpu_custom_call.1} parent=1 // pred_fallthru
      _
    %v21 = vld [vmem:[#allocation2] sm:$0xff]
    %v22 = vld [vmem:[#allocation2 + $0x8] sm:$0xff]
    %v23 = vadd.f32 %v21, %v22
    %24 = vadd.xlane.f32.xlu0 %v23
    %v25 = vpop.xlane.xlu0 %24
    %v26 = vmul.f32 %v25, 0.00390625
    %v27 = vxor.u32 %v26, 2147483648
    %v28 = vmul.f32 %v27, 1.442695
    %v29 = vpow.pop %v28
    %v30 = vadd.f32 %v29, 1.0
    %v31 = vrcp.pop %v30
    %v32 = vmul.f32 1.0, %v31
    %v33 = vmul.f32 %v21, %v32
    %v34 = vmul.f32 %v22, %v32
    %35 = vst [vmem:[#allocation5] sm:$0xff] %v33
    %36 = vst [vmem:[#allocation5 + $0x8] sm:$0xff] %v34
    // Predicated region
    $region10: #{tpu_custom_call.1} parent=1 // pred_check
      _
    $region11: #{tpu_custom_call.1} parent=1 // pred_check_branch
      %38 = sbr.rel (0) target = $region13
    $region12: #{tpu_custom_call.1} parent=1 // pred_region
      %s40 = ssub.s32 256, 256
      %41 = vsyncadd [#allocation4], %s40
      %s43 = sshll.u32 [#allocation5], 4
      %s44 = int_to_ptr.vmem [resolvable:$true] %s43
      %46 = dma.vmem_to_hbm [thread:$0]  %s44, 256, %s1, [#allocation4]
    $region13: #{tpu_custom_call.1} parent=1 // pred_fallthru
      _
    // Predicated region
    $region14: #{tpu_custom_call.1} parent=1 // pred_check
      _
    $region15: #{tpu_custom_call.1} parent=1 // pred_check_branch
      %48 = sbr.rel (0) target = $region17
    $region16: #{tpu_custom_call.1} parent=1 // pred_region
      %49 = dma.done [#allocation4], 256
    $region17: #{tpu_custom_call.1} parent=1 // pred_fallthru
      _
    %50 = vsyncpa [#allocation3], 1
    %51 = vsyncpa [#allocation4], 1

</llo_original>
